<compile_context>
chip_gen: v7x
topology: tpu7x:2x2x1
jax: 0.10.0
libtpu: 0.0.40
codegen_flags: <defaults>
</compile_context>

<pallas_src>
import functools
import math

import jax
import jax.numpy as jnp
from jax import lax
from jax.experimental import pallas as pl
from jax.experimental.pallas import tpu as pltpu


def _pick_tile(total, pref):
    """Largest multiple-of-8 tile <= pref that divides total (else full size)."""
    if total <= pref:
        return total
    t = (pref // 8) * 8
    while t >= 8:
        if total % t == 0:
            return t
        t -= 8
    return total


# ---------------------------------------------------------------------------
# Pass 1: K/V projection (once per token, all heads at once, bf16 output).
# ---------------------------------------------------------------------------
def kv_project_kernel(k_ref, v_ref, wk_ref, bk_ref, wv_ref, bv_ref,
                      kp_ref, vp_ref):
    # k_ref/v_ref: (tr, d_model) f32;  w*_ref: (d_model, d_model) (already W^T)
    kp = jnp.dot(k_ref[...], wk_ref[...], preferred_element_type=jnp.float32)
    vp = jnp.dot(v_ref[...], wv_ref[...], preferred_element_type=jnp.float32)
    kp_ref[...] = (kp + bk_ref[...]).astype(kp_ref.dtype)
    vp_ref[...] = (vp + bv_ref[...]).astype(vp_ref.dtype)


def _project_kv(k, v, wk_t, bk2, wv_t, bv2, *, row_tile=256,
                out_dtype=jnp.bfloat16):
    bs, L, d_model = k.shape
    n_rows = bs * L
    tr = _pick_tile(n_rows, row_tile)

    k2 = k.reshape(n_rows, d_model)
    v2 = v.reshape(n_rows, d_model)

    row_spec = pl.BlockSpec((tr, d_model), lambda i: (i, 0))
    w_spec = pl.BlockSpec((d_model, d_model), lambda i: (0, 0))   # resident
    b_spec = pl.BlockSpec((1, d_model), lambda i: (0, 0))

    kp, vp = pl.pallas_call(
        kv_project_kernel,
        out_shape=(jax.ShapeDtypeStruct((n_rows, d_model), out_dtype),
                   jax.ShapeDtypeStruct((n_rows, d_model), out_dtype)),
        grid_spec=pltpu.PrefetchScalarGridSpec(
            num_scalar_prefetch=0,
            grid=(n_rows // tr,),
            in_specs=[row_spec, row_spec, w_spec, b_spec, w_spec, b_spec],
            out_specs=(row_spec, row_spec)),
        compiler_params=pltpu.CompilerParams(
            dimension_semantics=("parallel",)),
    )(k2, v2, wk_t, bk2, wv_t, bv2)

    return kp.reshape(bs, L, d_model), vp.reshape(bs, L, d_model)


# ---------------------------------------------------------------------------
# Pass 2: flash attention with fused (scaled) Q projection.
# ---------------------------------------------------------------------------
def mha_attn_kernel(q_ref, kp_ref, vp_ref, wq_ref, bq_ref, o_ref,
                    qh_ref, acc_ref, m_ref, l_ref,
                    *, n_head, scale):
    # q_ref:   (1, tq,  d_model) f32      kp_ref/vp_ref: (1, tkv, d_model) bf16
    # wq_ref:  (d_model, d_model) f32 (already W^T)   bq_ref: (1, d_model)
    # o_ref:   (1, tq, d_model) f32 (lane-dense; head h -> cols [h*dt,(h+1)*dt))
    # scratch: qh (tq,d_model) bf16, acc (tq,d_model) f32, m/l (n_head,tq,1) f32
    ki = pl.program_id(2)
    n_kv = pl.num_programs(2)

    tq, d_model = acc_ref.shape
    d_tensor = d_model // n_head

    @pl.when(ki == 0)
    def _init():
        # Full-width Q projection once per (batch, q-tile); fold the
        # 1/sqrt(d_tensor) scale into qh before the bf16 cast.
        qh = jnp.dot(q_ref[0], wq_ref[...], preferred_element_type=jnp.float32)
        qh_ref[...] = ((qh + bq_ref[...]) * scale).astype(qh_ref.dtype)
        m_ref[...] = jnp.full(m_ref.shape, -jnp.inf, dtype=m_ref.dtype)
        l_ref[...] = jnp.zeros(l_ref.shape, dtype=l_ref.dtype)
        acc_ref[...] = jnp.zeros(acc_ref.shape, dtype=acc_ref.dtype)

    kh = kp_ref[0]            # (tkv, d_model) bf16, already projected
    vh = vp_ref[0]            # (tkv, d_model) bf16, already projected
    qh = qh_ref[...]          # (tq,  d_model) bf16, already projected+scaled

    # Online-softmax flash attention, statically unrolled over heads.
    for h in range(n_head):
        sl = slice(h * d_tensor, (h + 1) * d_tensor)
        # Contract last dims of both operands -> no materialized kh.T.
        s = lax.dot_general(qh[:, sl], kh[:, sl], (((1,), (1,)), ((), ())),
                            preferred_element_type=jnp.float32)    # (tq, tkv)
        m_prev = m_ref[h]                                           # (tq, 1)
        m_new = jnp.maximum(m_prev, jnp.max(s, axis=-1, keepdims=True))
        alpha = jnp.exp(m_prev - m_new)
        p = jnp.exp(s - m_new)
        l_ref[h] = alpha * l_ref[h] + jnp.sum(p, axis=-1, keepdims=True)
        pv = lax.dot_general(p.astype(vh.dtype), vh[:, sl],
                             (((1,), (0,)), ((), ())),
                             preferred_element_type=jnp.float32)    # (tq, dt)
        acc_ref[:, sl] = alpha * acc_ref[:, sl] + pv
        m_ref[h] = m_new

    @pl.when(ki == n_kv - 1)
    def _finalize():
        # Normalize once after PV with the EUP approx reciprocal, then store
        # the whole (tq, d_model) block in one lane-dense write.
        inv_cols = [
            jnp.broadcast_to(pl.reciprocal(l_ref[h], approx=True),
                             (tq, d_tensor))
            for h in range(n_head)
        ]
        inv = jnp.concatenate(inv_cols, axis=-1)                    # (tq, d_model)
        o_ref[0] = (acc_ref[...] * inv).astype(o_ref.dtype)


def multi_head_attention(q, k, v, params, n_head, *,
                         q_tile=128, kv_tile=256,
                         attn_dtype=jnp.bfloat16):
    """q, k, v: (bs, L, d_model) float32.  Returns (bs, n_head, L, d_tensor)."""
    bs, L, d_model = q.shape
    assert d_model % n_head == 0
    d_tensor = d_model // n_head
    wq, bq, wk, bk, wv, bv = params          # nn.Linear convention: W is (out, in)

    # y = x @ W.T + b -> pre-transpose W once in the wrapper (plain XLA op).
    wq_t, wk_t, wv_t = jnp.transpose(wq), jnp.transpose(wk), jnp.transpose(wv)
    bq2, bk2, bv2 = (b.reshape(1, d_model) for b in (bq, bk, bv))

    # Pass 1: project K/V exactly once per token (bf16, lane-dense).
    kp, vp = _project_kv(k, v, wk_t, bk2, wv_t, bv2, out_dtype=attn_dtype)

    tq = _pick_tile(L, q_tile)
    tkv = _pick_tile(L, kv_tile)
    # TODO(synk): non-divisible sequence lengths fall back to full-length tiles;
    # masked tail tiles would be needed to tile them finely.

    grid = (bs, L // tq, L // tkv)

    q_spec = pl.BlockSpec((1, tq, d_model), lambda b, qi, ki: (b, qi, 0))
    kv_spec = pl.BlockSpec((1, tkv, d_model), lambda b, qi, ki: (b, ki, 0))
    w_spec = pl.BlockSpec((d_model, d_model), lambda b, qi, ki: (0, 0))   # resident
    b_spec = pl.BlockSpec((1, d_model), lambda b, qi, ki: (0, 0))
    out_spec = pl.BlockSpec((1, tq, d_model), lambda b, qi, ki: (b, qi, 0))

    kernel = functools.partial(mha_attn_kernel, n_head=n_head,
                               scale=1.0 / math.sqrt(d_tensor))

    out = pl.pallas_call(
        kernel,
        out_shape=jax.ShapeDtypeStruct((bs, L, d_model), jnp.float32),
        grid_spec=pltpu.PrefetchScalarGridSpec(
            num_scalar_prefetch=0,
            grid=grid,
            in_specs=[q_spec, kv_spec, kv_spec, w_spec, b_spec],
            out_specs=out_spec,
            scratch_shapes=[
                pltpu.VMEM((tq, d_model), attn_dtype),       # scaled projected Q
                pltpu.VMEM((tq, d_model), jnp.float32),      # acc
                pltpu.VMEM((n_head, tq, 1), jnp.float32),    # running max m
                pltpu.VMEM((n_head, tq, 1), jnp.float32),    # running sum l
            ],
        ),
        compiler_params=pltpu.CompilerParams(
            dimension_semantics=("parallel", "parallel", "arbitrary"),
            vmem_limit_bytes=64 * 1024 * 1024),
    )(q, kp, vp, wq_t, bq2)

    # Lane-dense kernel output (bs, L, d_model) -> (bs, n_head, L, d_tensor),
    # identical to view(bs, L, n_head, dt).permute(0, 2, 1, 3).
    return out.reshape(bs, L, n_head, d_tensor).transpose(0, 2, 1, 3)


def reference_mha(q, k, v, params, n_head):
    bs, L, d_model = q.shape
    d_tensor = d_model // n_head
    wq, bq, wk, bk, wv, bv = params
    qp = q @ wq.T + bq
    kp = k @ wk.T + bk
    vp = v @ wv.T + bv

    def to_heads(x):
        return jnp.transpose(x.reshape(bs, L, n_head, d_tensor), (0, 2, 1, 3))

    qh, kh, vh = to_heads(qp), to_heads(kp), to_heads(vp)
    scores = jnp.einsum('bhqd,bhkd->bhqk', qh, kh) / math.sqrt(d_tensor)
    p = jax.nn.softmax(scores, axis=-1)
    return jnp.einsum('bhqk,bhkd->bhqd', p, vh)


def init_linear_params(key, d_model):
    # Deterministic init mirroring nn.Linear's uniform(-1/sqrt(in), 1/sqrt(in)).
    bound = 1.0 / math.sqrt(d_model)
    kw, kb = jax.random.split(key)
    w = jax.random.uniform(kw, (d_model, d_model), jnp.float32, -bound, bound)
    b = jax.random.uniform(kb, (d_model,), jnp.float32, -bound, bound)
    return w, b


if __name__ == "__main__":
    bs, L, d_model, n_head = 2, 8, 32, 4

    key = jax.random.PRNGKey(0)
    kq, kk, kv, kwq, kwk, kwv = jax.random.split(key, 6)

    q = jax.random.normal(kq, (bs, L, d_model), jnp.float32)
    k = jax.random.normal(kk, (bs, L, d_model), jnp.float32)
    v = jax.random.normal(kv, (bs, L, d_model), jnp.float32)

    wq, bq = init_linear_params(kwq, d_model)
    wk, bk = init_linear_params(kwk, d_model)
    wv, bv = init_linear_params(kwv, d_model)
    params = (wq, bq, wk, bk, wv, bv)

    out = multi_head_attention(q, k, v, params, n_head)
    out = jax.block_until_ready(out)

    ref = reference_mha(q, k, v, params, n_head)
    assert out.shape == (bs, n_head, L, d_model // n_head)
    err = float(jnp.max(jnp.abs(out - ref)))
    # bf16 K/V/Q attention operands (f32 accumulation) + approx reciprocal.
    assert err < 5e-2, f"max abs error {err}"

    print("KERNEL_OK")
</pallas_src>

<mosaic_0001>
module attributes {stable_mosaic.version = 11 : i64} {
  func.func @kv_project_kernel(%arg0: i32, %arg1: memref<16x32xf32, #tpu.memory_space<vmem>>, %arg2: memref<16x32xf32, #tpu.memory_space<vmem>>, %arg3: memref<32x32xf32, #tpu.memory_space<vmem>>, %arg4: memref<1x32xf32, #tpu.memory_space<vmem>>, %arg5: memref<32x32xf32, #tpu.memory_space<vmem>>, %arg6: memref<1x32xf32, #tpu.memory_space<vmem>>, %arg7: memref<16x32xbf16, #tpu.memory_space<vmem>>, %arg8: memref<16x32xbf16, #tpu.memory_space<vmem>>) attributes {dimension_semantics = [#tpu.dimension_semantics<parallel>], iteration_bounds = array<i64: 1>, scalar_prefetch = 0 : i64, scratch_operands = 0 : i64, tpu.core_type = #tpu.core_type<tc>, window_params = [{transform_indices = @transform_0, window_bounds = array<i64: 16, 32>}, {transform_indices = @transform_1, window_bounds = array<i64: 16, 32>}, {pipeline_mode = #tpu.pipeline_mode<synchronous>, transform_indices = @transform_2, window_bounds = array<i64: 32, 32>}, {pipeline_mode = #tpu.pipeline_mode<synchronous>, transform_indices = @transform_3, window_bounds = array<i64: 1, 32>}, {pipeline_mode = #tpu.pipeline_mode<synchronous>, transform_indices = @transform_4, window_bounds = array<i64: 32, 32>}, {pipeline_mode = #tpu.pipeline_mode<synchronous>, transform_indices = @transform_5, window_bounds = array<i64: 1, 32>}, {transform_indices = @transform_6, window_bounds = array<i64: 16, 32>}, {transform_indices = @transform_7, window_bounds = array<i64: 16, 32>}]} {
    %c0 = arith.constant 0 : index
    %c0_0 = arith.constant 0 : index
    %0 = vector.load %arg1[%c0, %c0_0] : memref<16x32xf32, #tpu.memory_space<vmem>>, vector<16x32xf32>
    %c0_1 = arith.constant 0 : index
    %c0_2 = arith.constant 0 : index
    %1 = vector.load %arg3[%c0_1, %c0_2] : memref<32x32xf32, #tpu.memory_space<vmem>>, vector<32x32xf32>
    %cst = arith.constant dense<0.000000e+00> : vector<16x32xf32>
    %2 = tpu.matmul %0, %1, %cst {dimension_numbers = #tpu.dot_dimension_numbers<[1], [0], [0], [1], [0, 0, 1, 1], [], []>} : vector<16x32xf32>, vector<32x32xf32>, vector<16x32xf32> -> vector<16x32xf32>
    %c0_3 = arith.constant 0 : index
    %c0_4 = arith.constant 0 : index
    %3 = vector.load %arg2[%c0_3, %c0_4] : memref<16x32xf32, #tpu.memory_space<vmem>>, vector<16x32xf32>
    %c0_5 = arith.constant 0 : index
    %c0_6 = arith.constant 0 : index
    %4 = vector.load %arg5[%c0_5, %c0_6] : memref<32x32xf32, #tpu.memory_space<vmem>>, vector<32x32xf32>
    %cst_7 = arith.constant dense<0.000000e+00> : vector<16x32xf32>
    %5 = tpu.matmul %3, %4, %cst_7 {dimension_numbers = #tpu.dot_dimension_numbers<[1], [0], [0], [1], [0, 0, 1, 1], [], []>} : vector<16x32xf32>, vector<32x32xf32>, vector<16x32xf32> -> vector<16x32xf32>
    %c0_8 = arith.constant 0 : index
    %c0_9 = arith.constant 0 : index
    %6 = vector.load %arg4[%c0_8, %c0_9] : memref<1x32xf32, #tpu.memory_space<vmem>>, vector<1x32xf32>
    %7 = vector.broadcast %6 : vector<1x32xf32> to vector<16x32xf32>
    %8 = arith.addf %2, %7 : vector<16x32xf32>
    %9 = arith.truncf %8 : vector<16x32xf32> to vector<16x32xbf16>
    %c0_10 = arith.constant 0 : index
    %c0_11 = arith.constant 0 : index
    %10 = vector.load %arg7[%c0_10, %c0_11] : memref<16x32xbf16, #tpu.memory_space<vmem>>, vector<16x32xbf16>
    tpu.vector_store %arg7[%c0_10, %c0_11], %9 {strides = array<i32>} : memref<16x32xbf16, #tpu.memory_space<vmem>>, vector<16x32xbf16>,
    %c0_12 = arith.constant 0 : index
    %c0_13 = arith.constant 0 : index
    %11 = vector.load %arg6[%c0_12, %c0_13] : memref<1x32xf32, #tpu.memory_space<vmem>>, vector<1x32xf32>
    %12 = vector.broadcast %11 : vector<1x32xf32> to vector<16x32xf32>
    %13 = arith.addf %5, %12 : vector<16x32xf32>
    %14 = arith.truncf %13 : vector<16x32xf32> to vector<16x32xbf16>
    %c0_14 = arith.constant 0 : index
    %c0_15 = arith.constant 0 : index
    %15 = vector.load %arg8[%c0_14, %c0_15] : memref<16x32xbf16, #tpu.memory_space<vmem>>, vector<16x32xbf16>
    tpu.vector_store %arg8[%c0_14, %c0_15], %14 {strides = array<i32>} : memref<16x32xbf16, #tpu.memory_space<vmem>>, vector<16x32xbf16>,
    return
  }
  func.func @transform_0(%arg0: i32) -> (i32, i32) {
    %c0_i32 = arith.constant 0 : i32
    %c0_i32_0 = arith.constant 0 : i32
    return %arg0, %c0_i32 : i32, i32
  }
  func.func @transform_1(%arg0: i32) -> (i32, i32) {
    %c0_i32 = arith.constant 0 : i32
    %c0_i32_0 = arith.constant 0 : i32
    return %arg0, %c0_i32 : i32, i32
  }
  func.func @transform_2(%arg0: i32) -> (i32, i32) {
    %c0_i32 = arith.constant 0 : i32
    %c0_i32_0 = arith.constant 0 : i32
    %c0_i32_1 = arith.constant 0 : i32
    return %c0_i32, %c0_i32_0 : i32, i32
  }
  func.func @transform_3(%arg0: i32) -> (i32, i32) {
    %c0_i32 = arith.constant 0 : i32
    %c0_i32_0 = arith.constant 0 : i32
    %c0_i32_1 = arith.constant 0 : i32
    return %c0_i32, %c0_i32_0 : i32, i32
  }
  func.func @transform_4(%arg0: i32) -> (i32, i32) {
    %c0_i32 = arith.constant 0 : i32
    %c0_i32_0 = arith.constant 0 : i32
    %c0_i32_1 = arith.constant 0 : i32
    return %c0_i32, %c0_i32_0 : i32, i32
  }
  func.func @transform_5(%arg0: i32) -> (i32, i32) {
    %c0_i32 = arith.constant 0 : i32
    %c0_i32_0 = arith.constant 0 : i32
    %c0_i32_1 = arith.constant 0 : i32
    return %c0_i32, %c0_i32_0 : i32, i32
  }
  func.func @transform_6(%arg0: i32) -> (i32, i32) {
    %c0_i32 = arith.constant 0 : i32
    %c0_i32_0 = arith.constant 0 : i32
    return %arg0, %c0_i32 : i32, i32
  }
  func.func @transform_7(%arg0: i32) -> (i32, i32) {
    %c0_i32 = arith.constant 0 : i32
    %c0_i32_0 = arith.constant 0 : i32
    return %arg0, %c0_i32 : i32, i32
  }
}

</mosaic_0001>

<llo_original>
// kernel: tpu_custom_call.1
$region0: #{tpu_custom_call.1}
  #allocation0 [shape = 'u32[]', space=smem, size = 0x4, offset = 0x4, fixed_abs, tag = 'smem constant byte address 0x4 - core index']
  #allocation1 [shape = 'u32[144,128]{1,0:T(1,128)}', space=vmem, size = 0x12000, scoped, tag = 'internal scratch']
  %s0 = inlined_call_operand.hbm [shape: f32[16,32], index: 0, kind: input, shape index: {}]
  %s1 = inlined_call_operand.hbm [shape: f32[16,32], index: 1, kind: input, shape index: {}]
  %s2 = inlined_call_operand.hbm [shape: f32[32,32], index: 2, kind: input, shape index: {}]
  %s3 = inlined_call_operand.vmem [shape: f32[1,32], index: 3, kind: input, shape index: {}]
  %s4 = inlined_call_operand.hbm [shape: f32[32,32], index: 4, kind: input, shape index: {}]
  %s5 = inlined_call_operand.vmem [shape: f32[1,32], index: 5, kind: input, shape index: {}]
  %s6 = inlined_call_operand.hbm [shape: bf16[16,32], index: 6, kind: output, shape index: {0}]
  %s7 = inlined_call_operand.hbm [shape: bf16[16,32], index: 7, kind: output, shape index: {1}]
  %8 = xla_tuple %s6, %s7
  %s9 = sld [smem:[#allocation0]]
  $region58: #{tpu_custom_call.1} parent=0
    _
  %s11 = ssub.s32 1, %s9
  %s12 = scalar_select 0, %s11, %s9
  $region1: #{tpu_custom_call.1} parent=0
    #allocation2 [shape = 'u8[8192]{0}', space=vmem, size = 0x2000, scoped, tag = 'input window, operand 0, single buffered']
    #allocation3 [shape = 's32[1]{0}', space=sflag, size = 0x4, scoped, tag = 'scoped memory for tpu_custom_call.1']
    #allocation4 [shape = 's32[1]{0}', space=sflag, size = 0x4, scoped, tag = 'scoped memory for tpu_custom_call.1']
    #allocation5 [shape = 'u8[8192]{0}', space=vmem, size = 0x2000, scoped, tag = 'input window, operand 1, single buffered']
    #allocation6 [shape = 's32[1]{0}', space=sflag, size = 0x4, scoped, tag = 'scoped memory for tpu_custom_call.1']
    #allocation7 [shape = 'u8[16384]{0}', space=vmem, size = 0x4000, scoped, tag = 'input window, operand 2, single buffered']
    #allocation8 [shape = 'u8[16384]{0}', space=vmem, size = 0x4000, scoped, tag = 'input window, operand 4, single buffered']
    #allocation9 [shape = 's32[1]{0}', space=sflag, size = 0x4, scoped, tag = 'scoped memory for tpu_custom_call.1']
    #allocation10 [shape = 'u8[4096]{0}', space=vmem, size = 0x1000, scoped, tag = 'output window, operand 0, single buffered']
    #allocation11 [shape = 'u8[4096]{0}', space=vmem, size = 0x1000, scoped, tag = 'output window, operand 1, single buffered']
    #allocation12 [shape = 's32[1]{0}', space=sflag, size = 0x4, scoped, tag = 'scoped memory for tpu_custom_call.1']
    %13 = vsyncpa [#allocation3], 0
    %14 = vsyncpa [#allocation6], 0
    %15 = vsyncpa [#allocation9], 0
    %16 = vsyncpa [#allocation4], 0
    %17 = vsyncpa [#allocation12], 0
    // Predicated region
    $region2: #{tpu_custom_call.1} parent=1 // pred_check
      _
    $region3: #{tpu_custom_call.1} parent=1 // pred_check_branch
      %19 = sbr.rel (0) target = $region5
    $region4: #{tpu_custom_call.1} parent=1 // pred_region
      %s21 = ssub.s32 256, 256
      %22 = vsyncadd [#allocation3], %s21
      %s23 = sshll.u32 [#allocation2], 4
      %s24 = int_to_ptr.vmem [resolvable:$true] %s23
      %29 = dma.hbm_to_vmem [thread:$0]  %s0, 256, %s24, [#allocation3], 128, 128, 8
    $region5: #{tpu_custom_call.1} parent=1 // pred_fallthru
      _
    // Predicated region
    $region6: #{tpu_custom_call.1} parent=1 // pred_check
      _
    $region7: #{tpu_custom_call.1} parent=1 // pred_check_branch
      %31 = sbr.rel (0) target = $region9
    $region8: #{tpu_custom_call.1} parent=1 // pred_region
      %s33 = ssub.s32 256, 256
      %34 = vsyncadd [#allocation6], %s33
      %s35 = sshll.u32 [#allocation5], 4
      %s36 = int_to_ptr.vmem [resolvable:$true] %s35
      %41 = dma.hbm_to_vmem [thread:$0]  %s1, 256, %s36, [#allocation6], 128, 128, 8
    $region9: #{tpu_custom_call.1} parent=1 // pred_fallthru
      _
    // Predicated region
    $region10: #{tpu_custom_call.1} parent=1 // pred_check
      _
    $region11: #{tpu_custom_call.1} parent=1 // pred_check_branch
      %43 = sbr.rel (0) target = $region13
    $region12: #{tpu_custom_call.1} parent=1 // pred_region
      %s45 = ssub.s32 512, 512
      %46 = vsyncadd [#allocation6], %s45
      %s47 = sshll.u32 [#allocation7], 4
      %s48 = int_to_ptr.vmem [resolvable:$true] %s47
      %53 = dma.hbm_to_vmem [thread:$0]  %s2, 512, %s48, [#allocation6], 128, 128, 8
    $region13: #{tpu_custom_call.1} parent=1 // pred_fallthru
      _
    // Predicated region
    $region14: #{tpu_custom_call.1} parent=1 // pred_check
      _
    $region15: #{tpu_custom_call.1} parent=1 // pred_check_branch
      %55 = sbr.rel (0) target = $region17
    $region16: #{tpu_custom_call.1} parent=1 // pred_region
      _
    $region17: #{tpu_custom_call.1} parent=1 // pred_fallthru
      _
    // Predicated region
    $region18: #{tpu_custom_call.1} parent=1 // pred_check
      _
    $region19: #{tpu_custom_call.1} parent=1 // pred_check_branch
      %57 = sbr.rel (0) target = $region21
    $region20: #{tpu_custom_call.1} parent=1 // pred_region
      %s59 = ssub.s32 512, 512
      %60 = vsyncadd [#allocation9], %s59
      %s61 = sshll.u32 [#allocation8], 4
      %s62 = int_to_ptr.vmem [resolvable:$true] %s61
      %67 = dma.hbm_to_vmem [thread:$0]  %s4, 512, %s62, [#allocation9], 128, 128, 8
    $region21: #{tpu_custom_call.1} parent=1 // pred_fallthru
      _
    // Predicated region
    $region22: #{tpu_custom_call.1} parent=1 // pred_check
      _
    $region23: #{tpu_custom_call.1} parent=1 // pred_check_branch
      %69 = sbr.rel (0) target = $region25
    $region24: #{tpu_custom_call.1} parent=1 // pred_region
      _
    $region25: #{tpu_custom_call.1} parent=1 // pred_fallthru
      _
    // Predicated region
    $region26: #{tpu_custom_call.1} parent=1 // pred_check
      _
    $region27: #{tpu_custom_call.1} parent=1 // pred_check_branch
      %71 = sbr.rel (0) target = $region29
    $region28: #{tpu_custom_call.1} parent=1 // pred_region
      %72 = dma.done [#allocation3], 256
    $region29: #{tpu_custom_call.1} parent=1 // pred_fallthru
      _
    // Predicated region
    $region30: #{tpu_custom_call.1} parent=1 // pred_check
      _
    $region31: #{tpu_custom_call.1} parent=1 // pred_check_branch
      %74 = sbr.rel (0) target = $region33
    $region32: #{tpu_custom_call.1} parent=1 // pred_region
      %75 = dma.done [#allocation6], 256
    $region33: #{tpu_custom_call.1} parent=1 // pred_fallthru
      _
    // Predicated region
    $region34: #{tpu_custom_call.1} parent=1 // pred_check
      _
    $region35: #{tpu_custom_call.1} parent=1 // pred_check_branch
      %77 = sbr.rel (0) target = $region37
    $region36: #{tpu_custom_call.1} parent=1 // pred_region
      %78 = dma.done [#allocation6], 512
    $region37: #{tpu_custom_call.1} parent=1 // pred_fallthru
      _
    // Predicated region
    $region38: #{tpu_custom_call.1} parent=1 // pred_check
      _
    $region39: #{tpu_custom_call.1} parent=1 // pred_check_branch
      %80 = sbr.rel (0) target = $region41
    $region40: #{tpu_custom_call.1} parent=1 // pred_region
      %81 = dma.done [#allocation9], 512
    $region41: #{tpu_custom_call.1} parent=1 // pred_fallthru
      _
    %v82 = vld [vmem:[#allocation2] sm:$0xff]
    %v83 = vld [vmem:[#allocation2 + $0x8] sm:$0xff]
    %v84 = vld [vmem:[#allocation7] sm:$0xff]
    %v85 = vld [vmem:[#allocation7 + $0x8] sm:$0xff]
    %v86 = vld [vmem:[#allocation7 + $0x10] sm:$0xff]
    %v87 = vld [vmem:[#allocation7 + $0x18] sm:$0xff]
    %v88 = vld [vmem:[#allocation5] sm:$0xff]
    %v89 = vld [vmem:[#allocation5 + $0x8] sm:$0xff]
    %v90 = vld [vmem:[#allocation8] sm:$0xff]
    %v91 = vld [vmem:[#allocation8 + $0x8] sm:$0xff]
    %v92 = vld [vmem:[#allocation8 + $0x10] sm:$0xff]
    %v93 = vld [vmem:[#allocation8 + $0x18] sm:$0xff]
    %v94 = vld [vmem:[%s3] sm:$0x1]
    %v96 = vlaneseq
    %v97 = vshrl.u32 %v96, 7
    %v98 = vsub.s32 0, %v97
    %v99 = vrot.slane %v94, %v98
    %vm101 = vcmask 261120
    %v103 = vsel %vm101, %v82, 0
    %v106 = vsel %vm101, %v83, 0
    %108 = vmatprep.subr.mxu0 0.0
    %109 = vmatpush1.msra.mxu0 %v84
    %110 = vmatprep.subr.mxu0 0.0
    %111 = vmatpush1.msra.mxu0 %v85
    %112 = vmatprep.subr.mxu0 0.0
    %113 = vmatpush1.msra.mxu0 %v86
    %114 = vmatprep.subr.mxu0 0.0
    %115 = vmatpush1.msra.mxu0 %v87
    %116 = vmatprep.subr.mxu0 0.0
    %117 = vmatpush1.msra.mxu0 0.0
    %118 = vmatprep.subr.mxu0 0.0
    %119 = vmatpush1.msra.mxu0 0.0
    %120 = vmatprep.subr.mxu0 0.0
    %121 = vmatpush1.msra.mxu0 0.0
    %122 = vmatprep.subr.mxu0 0.0
    %123 = vmatpush1.msra.mxu0 0.0
    %124 = vmatprep.subr.mxu0 0.0
    %125 = vmatpush1.msra.mxu0 0.0
    %126 = vmatprep.subr.mxu0 0.0
    %127 = vmatpush1.msra.mxu0 0.0
    %128 = vmatprep.subr.mxu0 0.0
    %129 = vmatpush1.msra.mxu0 0.0
    %130 = vmatprep.subr.mxu0 0.0
    %131 = vmatpush1.msra.mxu0 0.0
    %132 = vmatprep.subr.mxu0 0.0
    %133 = vmatpush1.msra.mxu0 0.0
    %134 = vmatprep.subr.mxu0 0.0
    %135 = vmatpush1.msra.mxu0 0.0
    %136 = vmatprep.subr.mxu0 0.0
    %137 = vmatpush1.msra.mxu0 0.0
    %138 = vmatprep.subr.mxu0 0.0
    %139 = vmatpush1.msra.mxu0 0.0
    %140 = vmatprep.subr.mxu0 0.0
    %141 = vmatpush1.msra.mxu0 0.0
    %142 = vmatprep.subr.mxu0 0.0
    %143 = vmatpush1.msra.mxu0 0.0
    %144 = vmatprep.subr.mxu0 0.0
    %145 = vmatpush1.msra.mxu0 0.0
    %146 = vmatprep.subr.mxu0 0.0
    %147 = vmatpush1.msra.mxu0 0.0
    %148 = vmatprep.subr.mxu0 0.0
    %149 = vmatpush1.msra.mxu0 0.0
    %150 = vmatprep.subr.mxu0 0.0
    %151 = vmatpush1.msra.mxu0 0.0
    %152 = vmatprep.subr.mxu0 0.0
    %153 = vmatpush1.msra.mxu0 0.0
    %154 = vmatprep.subr.mxu0 0.0
    %155 = vmatpush1.msra.mxu0 0.0
    %156 = vmatprep.subr.mxu0 0.0
    %157 = vmatpush1.msra.mxu0 0.0
    %158 = vmatprep.subr.mxu0 0.0
    %159 = vmatpush1.msra.mxu0 0.0
    %160 = vmatprep.subr.mxu0 0.0
    %161 = vmatpush1.msra.mxu0 0.0
    %162 = vmatprep.subr.mxu0 0.0
    %163 = vmatpush1.msra.mxu0 0.0
    %164 = vmatprep.subr.mxu0 0.0
    %165 = vmatpush1.msra.mxu0 0.0
    %166 = vmatprep.subr.mxu0 0.0
    %167 = vmatpush1.msra.mxu0 0.0
    %168 = vmatprep.subr.mxu0 0.0
    %169 = vmatpush1.msra.mxu0 0.0
    %170 = vmatprep.subr.mxu0 0.0
    %171 = vmatpush1.msra.mxu0 0.0
    %172 = vmatprep.mubr.f32.mxu0 0.0
    %173 = vmatmul.mubr.f32.gmra.mrb[0].mxu0 %v103
    %v174 = vpop.f32.mrb[0].mxu0
    %v175 = vadd.f32 %v99, %v174
    %v176 = vpop.f32.mrb[0].mxu0
    %177 = vmatprep.mubr.f32.mxu0 0.0
    %178 = vmatmul.mubr.f32.gmra.mrb[0].mxu0 %v106
    %v179 = vpop.f32.mrb[0].mxu0
    %v180 = vadd.f32 %v99, %v179
    %v181 = vpop.f32.mrb[0].mxu0
    %182 = vdwg.mxu0
    %v183 = vpack.c.bf16 %v180, %v175
    %v185 = vunpack.c.l.b16 %v183
    %v186 = vunpack.c.h.b16 %v183
    %v187 = vpack.c.b16 %v185, %v185
    %v188 = vpack.c.b16 %v186, %v186
    %vm191 = vcmask 257024
    %192 = vst.msk [vmem:[#allocation10] sm:$0xf] %vm191, %v187
    %193 = vst.msk [vmem:[#allocation10 + $0x4] sm:$0xf] %vm191, %v188
    %v194 = vld [vmem:[%s5] sm:$0x1]
    %v196 = vlaneseq
    %v197 = vshrl.u32 %v196, 7
    %v198 = vsub.s32 0, %v197
    %v199 = vrot.slane %v194, %v198
    %v202 = vsel %vm101, %v88, 0
    %v205 = vsel %vm101, %v89, 0
    %207 = vmatprep.subr.mxu0 0.0
    %208 = vmatpush1.msra.mxu0 %v90
    %209 = vmatprep.subr.mxu0 0.0
    %210 = vmatpush1.msra.mxu0 %v91
    %211 = vmatprep.subr.mxu0 0.0
    %212 = vmatpush1.msra.mxu0 %v92
    %213 = vmatprep.subr.mxu0 0.0
    %214 = vmatpush1.msra.mxu0 %v93
    %215 = vmatprep.subr.mxu0 0.0
    %216 = vmatpush1.msra.mxu0 0.0
    %217 = vmatprep.subr.mxu0 0.0
    %218 = vmatpush1.msra.mxu0 0.0
    %219 = vmatprep.subr.mxu0 0.0
    %220 = vmatpush1.msra.mxu0 0.0
    %221 = vmatprep.subr.mxu0 0.0
    %222 = vmatpush1.msra.mxu0 0.0
    %223 = vmatprep.subr.mxu0 0.0
    %224 = vmatpush1.msra.mxu0 0.0
    %225 = vmatprep.subr.mxu0 0.0
    %226 = vmatpush1.msra.mxu0 0.0
    %227 = vmatprep.subr.mxu0 0.0
    %228 = vmatpush1.msra.mxu0 0.0
    %229 = vmatprep.subr.mxu0 0.0
    %230 = vmatpush1.msra.mxu0 0.0
    %231 = vmatprep.subr.mxu0 0.0
    %232 = vmatpush1.msra.mxu0 0.0
    %233 = vmatprep.subr.mxu0 0.0
    %234 = vmatpush1.msra.mxu0 0.0
    %235 = vmatprep.subr.mxu0 0.0
    %236 = vmatpush1.msra.mxu0 0.0
    %237 = vmatprep.subr.mxu0 0.0
    %238 = vmatpush1.msra.mxu0 0.0
    %239 = vmatprep.subr.mxu0 0.0
    %240 = vmatpush1.msra.mxu0 0.0
    %241 = vmatprep.subr.mxu0 0.0
    %242 = vmatpush1.msra.mxu0 0.0
    %243 = vmatprep.subr.mxu0 0.0
    %244 = vmatpush1.msra.mxu0 0.0
    %245 = vmatprep.subr.mxu0 0.0
    %246 = vmatpush1.msra.mxu0 0.0
    %247 = vmatprep.subr.mxu0 0.0
    %248 = vmatpush1.msra.mxu0 0.0
    %249 = vmatprep.subr.mxu0 0.0
    %250 = vmatpush1.msra.mxu0 0.0
    %251 = vmatprep.subr.mxu0 0.0
    %252 = vmatpush1.msra.mxu0 0.0
    %253 = vmatprep.subr.mxu0 0.0
    %254 = vmatpush1.msra.mxu0 0.0
    %255 = vmatprep.subr.mxu0 0.0
    %256 = vmatpush1.msra.mxu0 0.0
    %257 = vmatprep.subr.mxu0 0.0
    %258 = vmatpush1.msra.mxu0 0.0
    %259 = vmatprep.subr.mxu0 0.0
    %260 = vmatpush1.msra.mxu0 0.0
    %261 = vmatprep.subr.mxu0 0.0
    %262 = vmatpush1.msra.mxu0 0.0
    %263 = vmatprep.subr.mxu0 0.0
    %264 = vmatpush1.msra.mxu0 0.0
    %265 = vmatprep.subr.mxu0 0.0
    %266 = vmatpush1.msra.mxu0 0.0
    %267 = vmatprep.subr.mxu0 0.0
    %268 = vmatpush1.msra.mxu0 0.0
    %269 = vmatprep.subr.mxu0 0.0
    %270 = vmatpush1.msra.mxu0 0.0
    %271 = vmatprep.mubr.f32.mxu0 0.0
    %272 = vmatmul.mubr.f32.gmra.mrb[0].mxu0 %v202
    %v273 = vpop.f32.mrb[0].mxu0
    %v274 = vadd.f32 %v199, %v273
    %v275 = vpop.f32.mrb[0].mxu0
    %276 = vmatprep.mubr.f32.mxu0 0.0
    %277 = vmatmul.mubr.f32.gmra.mrb[0].mxu0 %v205
    %v278 = vpop.f32.mrb[0].mxu0
    %v279 = vadd.f32 %v199, %v278
    %v280 = vpop.f32.mrb[0].mxu0
    %281 = vdwg.mxu0
    %v282 = vpack.c.bf16 %v279, %v274
    %v284 = vunpack.c.l.b16 %v282
    %v285 = vunpack.c.h.b16 %v282
    %v286 = vpack.c.b16 %v284, %v284
    %v287 = vpack.c.b16 %v285, %v285
    %290 = vst.msk [vmem:[#allocation11] sm:$0xf] %vm191, %v286
    %291 = vst.msk [vmem:[#allocation11 + $0x4] sm:$0xf] %vm191, %v287
    // Predicated region
    $region42: #{tpu_custom_call.1} parent=1 // pred_check
      _
    $region43: #{tpu_custom_call.1} parent=1 // pred_check_branch
      %293 = sbr.rel (0) target = $region45
    $region44: #{tpu_custom_call.1} parent=1 // pred_region
      %s295 = ssub.s32 128, 128
      %296 = vsyncadd [#allocation4], %s295
      %s297 = sshll.u32 [#allocation10], 4
      %s298 = int_to_ptr.vmem [resolvable:$true] %s297
      %303 = dma.vmem_to_hbm [thread:$0]  %s298, 128, %s6, [#allocation4], 64, 64, 4
    $region45: #{tpu_custom_call.1} parent=1 // pred_fallthru
      _
    // Predicated region
    $region46: #{tpu_custom_call.1} parent=1 // pred_check
      _
    $region47: #{tpu_custom_call.1} parent=1 // pred_check_branch
      %305 = sbr.rel (0) target = $region49
    $region48: #{tpu_custom_call.1} parent=1 // pred_region
      %s307 = ssub.s32 128, 128
      %308 = vsyncadd [#allocation12], %s307
      %s309 = sshll.u32 [#allocation11], 4
      %s310 = int_to_ptr.vmem [resolvable:$true] %s309
      %315 = dma.vmem_to_hbm [thread:$0]  %s310, 128, %s7, [#allocation12], 64, 64, 4
    $region49: #{tpu_custom_call.1} parent=1 // pred_fallthru
      _
    // Predicated region
    $region50: #{tpu_custom_call.1} parent=1 // pred_check
      _
    $region51: #{tpu_custom_call.1} parent=1 // pred_check_branch
      %317 = sbr.rel (0) target = $region53
    $region52: #{tpu_custom_call.1} parent=1 // pred_region
      %318 = dma.done [#allocation4], 128
    $region53: #{tpu_custom_call.1} parent=1 // pred_fallthru
      _
    // Predicated region
    $region54: #{tpu_custom_call.1} parent=1 // pred_check
      _
    $region55: #{tpu_custom_call.1} parent=1 // pred_check_branch
      %320 = sbr.rel (0) target = $region57
    $region56: #{tpu_custom_call.1} parent=1 // pred_region
      %321 = dma.done [#allocation12], 128
    $region57: #{tpu_custom_call.1} parent=1 // pred_fallthru
      _
    %322 = vsyncpa [#allocation3], 1
    %323 = vsyncpa [#allocation6], 1
    %324 = vsyncpa [#allocation9], 1
    %325 = vsyncpa [#allocation4], 1
    %326 = vsyncpa [#allocation12], 1

</llo_original>
